<compile_context>
chip_gen: v7x
topology: tpu7x:2x2x1
jax: 0.10.0
libtpu: 0.0.40
codegen_flags: <defaults>
</compile_context>

<pallas_src>
import jax
import jax.numpy as jnp
from jax import lax
from jax.experimental import pallas as pl
from jax.experimental.pallas import tpu as pltpu


def bilstm_kernel(x_ref,                       # (Tc*TB, V)  bf16   chunk of inputs
                  wih_f_ref, whh_f_ref, b_f_ref,   # (V,4H) (H,4H) bf16, (1,4H) f32
                  wih_b_ref, b_b_ref,              # (V,4H) bf16, (1,4H) f32
                  wo_f_ref, wo_b_ref, bo_ref,      # (H,V) (H,V) bf16, (1,V) f32
                  out_ref,                         # (TB, V) f32
                  h_scr, c_scr, xw_scr):           # (TB,H) (TB,H) (Tc*TB,4H) f32
    t = pl.program_id(1)
    TB, H = h_scr.shape
    TC = x_ref.shape[0] // TB
    bf16 = jnp.bfloat16

    @pl.when(t == 0)
    def _():
        h_scr[...] = jnp.zeros_like(h_scr)
        c_scr[...] = jnp.zeros_like(c_scr)

    # Hoisted, fused input projection for the whole chunk: one lane-dense
    # (TC*TB, V) x (V, 4H) GEMM with the (ih + hh) bias folded in.
    xw_scr[...] = (
        jnp.dot(x_ref[...], wih_f_ref[...], preferred_element_type=jnp.float32)
        + b_f_ref[...])

    def step(i, carry):
        h, c = carry
        row = pl.multiple_of(i * TB, TB)
        # Single fused-gate recurrent matmul (bf16 operands, f32 accumulate).
        g = xw_scr[pl.ds(row, TB), :] + jnp.dot(
            h.astype(bf16), whh_f_ref[...], preferred_element_type=jnp.float32)
        i_g = jax.nn.sigmoid(g[:, 0 * H:1 * H])
        f_g = jax.nn.sigmoid(g[:, 1 * H:2 * H])
        g_g = jnp.tanh(g[:, 2 * H:3 * H])
        o_g = jax.nn.sigmoid(g[:, 3 * H:4 * H])
        c_new = f_g * c + i_g * g_g
        h_new = o_g * jnp.tanh(c_new)
        return h_new, c_new

    h, c = lax.fori_loop(0, TC, step, (h_scr[...], c_scr[...]), unroll=True)
    h_scr[...] = h
    c_scr[...] = c

    @pl.when(t == pl.num_programs(1) - 1)
    def _():
        # Reverse direction at output position T-1 = one cell update on x[T-1]
        # from an all-zero (h, c): the h@Whh_rev and f*c terms vanish, so the
        # reverse recurrent weights are never needed.
        x_last = x_ref[pl.ds((TC - 1) * TB, TB), :]
        gb = (jnp.dot(x_last, wih_b_ref[...],
                      preferred_element_type=jnp.float32) + b_b_ref[...])
        i_b = jax.nn.sigmoid(gb[:, 0 * H:1 * H])
        g_b = jnp.tanh(gb[:, 2 * H:3 * H])
        o_b = jax.nn.sigmoid(gb[:, 3 * H:4 * H])
        h_b = o_b * jnp.tanh(i_b * g_b)

        # Final Linear without the lane concat: split Wo into fwd/bwd halves.
        out_ref[...] = (
            jnp.dot(h.astype(bf16), wo_f_ref[...],
                    preferred_element_type=jnp.float32)
            + jnp.dot(h_b.astype(bf16), wo_b_ref[...],
                      preferred_element_type=jnp.float32)
            + bo_ref[...])


def bilstm_forward(x, params, *, chunk_t=4, batch_tile=8):
    """x: (batch, seq, vocab) f32 -> (batch, vocab) f32."""
    B, T, V = x.shape
    H = params["whh_f"].shape[0]

    tc = min(chunk_t, T)
    while T % tc:             # pick a time-chunk size that divides T
        tc -= 1
    tb = batch_tile
    B_pad = -(-B // tb) * tb  # sublane-dense batch

    # (B,T,V) -> seq-major, pad batch, cast matmul operand to bf16.
    x_tbv = jnp.transpose(x, (1, 0, 2)).astype(jnp.bfloat16)
    if B_pad != B:
        x_tbv = jnp.pad(x_tbv, ((0, 0), (0, B_pad - B), (0, 0)))

    n_t = T // tc
    n_b = B_pad // tb
    # Regroup to (n_b, n_t, tc*tb, V): each block's rows are time-major then
    # batch, so one 2-D GEMM projects a whole chunk (pure wrapper-side layout).
    x_blk = (x_tbv.reshape(n_t, tc, n_b, tb, V)
                  .transpose(2, 0, 1, 3, 4)
                  .reshape(n_b, n_t, tc * tb, V))

    out = pl.pallas_call(
        bilstm_kernel,
        out_shape=jax.ShapeDtypeStruct((B_pad, V), jnp.float32),
        grid=(n_b, n_t),
        in_specs=[
            pl.BlockSpec((None, None, tc * tb, V), lambda b, t: (b, t, 0, 0)),
            pl.BlockSpec((V, 4 * H), lambda b, t: (0, 0)),   # wih_f (resident)
            pl.BlockSpec((H, 4 * H), lambda b, t: (0, 0)),   # whh_f
            pl.BlockSpec((1, 4 * H), lambda b, t: (0, 0)),   # b_f
            pl.BlockSpec((V, 4 * H), lambda b, t: (0, 0)),   # wih_b
            pl.BlockSpec((1, 4 * H), lambda b, t: (0, 0)),   # b_b
            pl.BlockSpec((H, V), lambda b, t: (0, 0)),       # wo_f
            pl.BlockSpec((H, V), lambda b, t: (0, 0)),       # wo_b
            pl.BlockSpec((1, V), lambda b, t: (0, 0)),       # bo
        ],
        out_specs=pl.BlockSpec((tb, V), lambda b, t: (b, 0)),
        scratch_shapes=[
            pltpu.VMEM((tb, H), jnp.float32),            # h carry
            pltpu.VMEM((tb, H), jnp.float32),            # c carry
            pltpu.VMEM((tc * tb, 4 * H), jnp.float32),   # hoisted input projection
        ],
        compiler_params=pltpu.CompilerParams(
            dimension_semantics=("parallel", "arbitrary")),
    )(x_blk,
      params["wih_f"], params["whh_f"], params["b_f"],
      params["wih_b"], params["b_b"],
      params["wo_f"], params["wo_b"], params["bo"])
    return out[:B]


def init_raw_params(key, vocab_size, hidden_dim):
    """PyTorch-layout raw parameters (nn.LSTM / nn.Linear), f32."""
    ks = jax.random.split(key, 9)
    H, V = hidden_dim, vocab_size
    k = 1.0 / float(H) ** 0.5

    def u(kk, shape):
        return jax.random.uniform(kk, shape, jnp.float32, -k, k)

    return {
        "weight_ih_l0": u(ks[0], (4 * H, V)),
        "weight_hh_l0": u(ks[1], (4 * H, H)),
        "bias_ih_l0": u(ks[2], (4 * H,)),
        "bias_hh_l0": u(ks[3], (4 * H,)),
        "weight_ih_l0_reverse": u(ks[4], (4 * H, V)),
        "weight_hh_l0_reverse": u(ks[5], (4 * H, H)),
        "bias_ih_l0_reverse": u(ks[6], (4 * H,)),
        "bias_hh_l0_reverse": u(ks[7], (4 * H,)),
        "W": u(ks[8], (V, 2 * H)),          # Linear(2H, V, bias=False).weight
        "b": jnp.ones((V,), jnp.float32),   # nn.Parameter(torch.ones(V))
    }


def prepare_params(raw):
    """Fuse/transpose/cast into the kernel layout (bf16 matmuls, f32 biases)."""
    H = raw["weight_hh_l0"].shape[1]
    bf16 = jnp.bfloat16
    return {
        "wih_f": raw["weight_ih_l0"].T.astype(bf16),                       # (V, 4H)
        "whh_f": raw["weight_hh_l0"].T.astype(bf16),                       # (H, 4H)
        "b_f":   (raw["bias_ih_l0"] + raw["bias_hh_l0"])[None, :],         # (1, 4H)
        "wih_b": raw["weight_ih_l0_reverse"].T.astype(bf16),               # (V, 4H)
        "b_b":   (raw["bias_ih_l0_reverse"] + raw["bias_hh_l0_reverse"])[None, :],
        "wo_f":  raw["W"][:, :H].T.astype(bf16),                           # (H, V)
        "wo_b":  raw["W"][:, H:].T.astype(bf16),                           # (H, V)
        "bo":    raw["b"][None, :],                                        # (1, V)
        # note: weight_hh_l0_reverse is intentionally not passed to the kernel.
    }


def bilstm_reference(x, raw):
    """Pure-JAX reference with the same bf16-operand / f32-accumulate numerics."""
    B, T, V = x.shape
    H = raw["weight_hh_l0"].shape[1]
    bf16 = jnp.bfloat16
    x_tbv = jnp.transpose(x, (1, 0, 2)).astype(bf16)

    def cell(x_t, h, c, wih_t, whh_t, b):
        g = (jnp.dot(x_t, wih_t, preferred_element_type=jnp.float32)
             + jnp.dot(h.astype(bf16), whh_t, preferred_element_type=jnp.float32)
             + b)
        i = jax.nn.sigmoid(g[:, 0 * H:1 * H])
        f = jax.nn.sigmoid(g[:, 1 * H:2 * H])
        gg = jnp.tanh(g[:, 2 * H:3 * H])
        o = jax.nn.sigmoid(g[:, 3 * H:4 * H])
        c_new = f * c + i * gg
        return o * jnp.tanh(c_new), c_new

    wih_f = raw["weight_ih_l0"].T.astype(bf16)
    whh_f = raw["weight_hh_l0"].T.astype(bf16)
    b_f = (raw["bias_ih_l0"] + raw["bias_hh_l0"])[None, :]
    wih_b = raw["weight_ih_l0_reverse"].T.astype(bf16)
    whh_b = raw["weight_hh_l0_reverse"].T.astype(bf16)
    b_b = (raw["bias_ih_l0_reverse"] + raw["bias_hh_l0_reverse"])[None, :]

    h = jnp.zeros((B, H), jnp.float32)
    c = jnp.zeros((B, H), jnp.float32)
    for t in range(T):
        h, c = cell(x_tbv[t], h, c, wih_f, whh_f, b_f)
    h_fwd = h
    z = jnp.zeros((B, H), jnp.float32)
    h_bwd, _ = cell(x_tbv[T - 1], z, z, wih_b, whh_b, b_b)  # reverse @ outputs[-1]
    h_cat = jnp.concatenate([h_fwd, h_bwd], axis=-1).astype(bf16)
    return (jnp.dot(h_cat, raw["W"].T.astype(bf16),
                    preferred_element_type=jnp.float32) + raw["b"][None, :])


if __name__ == "__main__":
    vocab_size = 16
    hidden_dim = 32
    batch = 2
    seq_len = 8

    key = jax.random.PRNGKey(0)
    k_params, k_x = jax.random.split(key)
    raw = init_raw_params(k_params, vocab_size, hidden_dim)
    params = prepare_params(raw)
    x = jax.random.normal(k_x, (batch, seq_len, vocab_size), jnp.float32)

    out = bilstm_forward(x, params)
    out = jax.block_until_ready(out)

    ref = bilstm_reference(x, raw)
    assert out.shape == (batch, vocab_size)
    max_diff = float(jnp.max(jnp.abs(out - ref)))
    assert jnp.allclose(out, ref, rtol=1e-2, atol=1e-2), (
        f"mismatch vs reference: max|diff|={max_diff}")

    print("KERNEL_OK")
</pallas_src>

<mosaic_0001>
module attributes {stable_mosaic.version = 11 : i64} {
  func.func @bilstm_kernel(%arg0: i32, %arg1: i32, %arg2: memref<1x1x32x16xbf16, #tpu.memory_space<vmem>>, %arg3: memref<16x128xbf16, #tpu.memory_space<vmem>>, %arg4: memref<32x128xbf16, #tpu.memory_space<vmem>>, %arg5: memref<1x128xf32, #tpu.memory_space<vmem>>, %arg6: memref<16x128xbf16, #tpu.memory_space<vmem>>, %arg7: memref<1x128xf32, #tpu.memory_space<vmem>>, %arg8: memref<32x16xbf16, #tpu.memory_space<vmem>>, %arg9: memref<32x16xbf16, #tpu.memory_space<vmem>>, %arg10: memref<1x16xf32, #tpu.memory_space<vmem>>, %arg11: memref<8x16xf32, #tpu.memory_space<vmem>>, %arg12: memref<8x32xf32, #tpu.memory_space<vmem>>, %arg13: memref<8x32xf32, #tpu.memory_space<vmem>>, %arg14: memref<32x128xf32, #tpu.memory_space<vmem>>) attributes {dimension_semantics = [#tpu.dimension_semantics<parallel>, #tpu.dimension_semantics<arbitrary>], iteration_bounds = array<i64: 1, 2>, scalar_prefetch = 0 : i64, scratch_operands = 3 : i64, tpu.core_type = #tpu.core_type<tc>, window_params = [{transform_indices = @transform_0, window_bounds = array<i64: 1, 1, 32, 16>}, {pipeline_mode = #tpu.pipeline_mode<synchronous>, transform_indices = @transform_1, window_bounds = array<i64: 16, 128>}, {pipeline_mode = #tpu.pipeline_mode<synchronous>, transform_indices = @transform_2, window_bounds = array<i64: 32, 128>}, {pipeline_mode = #tpu.pipeline_mode<synchronous>, transform_indices = @transform_3, window_bounds = array<i64: 1, 128>}, {pipeline_mode = #tpu.pipeline_mode<synchronous>, transform_indices = @transform_4, window_bounds = array<i64: 16, 128>}, {pipeline_mode = #tpu.pipeline_mode<synchronous>, transform_indices = @transform_5, window_bounds = array<i64: 1, 128>}, {pipeline_mode = #tpu.pipeline_mode<synchronous>, transform_indices = @transform_6, window_bounds = array<i64: 32, 16>}, {pipeline_mode = #tpu.pipeline_mode<synchronous>, transform_indices = @transform_7, window_bounds = array<i64: 32, 16>}, {pipeline_mode = #tpu.pipeline_mode<synchronous>, transform_indices = @transform_8, window_bounds = array<i64: 1, 16>}, {transform_indices = @transform_9, window_bounds = array<i64: 8, 16>}]} {
    %c0_i32 = arith.constant 0 : i32
    %0 = arith.cmpi eq, %arg1, %c0_i32 : i32
    %1 = arith.extui %0 : i1 to i32
    %c0_i32_0 = arith.constant 0 : i32
    %2 = arith.cmpi ne, %1, %c0_i32_0 : i32
    scf.if %2 {
      %cst_52 = arith.constant 0.000000e+00 : f32
      %150 = vector.broadcast %cst_52 : f32 to vector<8x32xf32>
      %c0_53 = arith.constant 0 : index
      %c0_54 = arith.constant 0 : index
      %151 = vector.load %arg12[%c0_53, %c0_54] : memref<8x32xf32, #tpu.memory_space<vmem>>, vector<8x32xf32>
      tpu.vector_store %arg12[%c0_53, %c0_54], %150 {strides = array<i32>} : memref<8x32xf32, #tpu.memory_space<vmem>>, vector<8x32xf32>,
      %cst_55 = arith.constant 0.000000e+00 : f32
      %152 = vector.broadcast %cst_55 : f32 to vector<8x32xf32>
      %c0_56 = arith.constant 0 : index
      %c0_57 = arith.constant 0 : index
      %153 = vector.load %arg13[%c0_56, %c0_57] : memref<8x32xf32, #tpu.memory_space<vmem>>, vector<8x32xf32>
      tpu.vector_store %arg13[%c0_56, %c0_57], %152 {strides = array<i32>} : memref<8x32xf32, #tpu.memory_space<vmem>>, vector<8x32xf32>,
    } else {
    }
    %c0 = arith.constant 0 : index
    %c0_1 = arith.constant 0 : index
    %c0_2 = arith.constant 0 : index
    %c0_3 = arith.constant 0 : index
    %3 = vector.load %arg2[%c0, %c0_1, %c0_2, %c0_3] : memref<1x1x32x16xbf16, #tpu.memory_space<vmem>>, vector<1x1x32x16xbf16>
    %4 = vector.shape_cast %3 : vector<1x1x32x16xbf16> to vector<32x16xbf16>
    %c0_4 = arith.constant 0 : index
    %c0_5 = arith.constant 0 : index
    %5 = vector.load %arg3[%c0_4, %c0_5] : memref<16x128xbf16, #tpu.memory_space<vmem>>, vector<16x128xbf16>
    %cst = arith.constant dense<0.000000e+00> : vector<32x128xf32>
    %6 = tpu.matmul %4, %5, %cst {dimension_numbers = #tpu.dot_dimension_numbers<[1], [0], [0], [1], [0, 0, 1, 1], [], []>} : vector<32x16xbf16>, vector<16x128xbf16>, vector<32x128xf32> -> vector<32x128xf32>
    %c0_6 = arith.constant 0 : index
    %c0_7 = arith.constant 0 : index
    %7 = vector.load %arg5[%c0_6, %c0_7] : memref<1x128xf32, #tpu.memory_space<vmem>>, vector<1x128xf32>
    %8 = vector.broadcast %7 : vector<1x128xf32> to vector<32x128xf32>
    %9 = arith.addf %6, %8 : vector<32x128xf32>
    %c0_8 = arith.constant 0 : index
    %c0_9 = arith.constant 0 : index
    %10 = vector.load %arg14[%c0_8, %c0_9] : memref<32x128xf32, #tpu.memory_space<vmem>>, vector<32x128xf32>
    tpu.vector_store %arg14[%c0_8, %c0_9], %9 {strides = array<i32>} : memref<32x128xf32, #tpu.memory_space<vmem>>, vector<32x128xf32>,
    %c0_10 = arith.constant 0 : index
    %c0_11 = arith.constant 0 : index
    %11 = vector.load %arg12[%c0_10, %c0_11] : memref<8x32xf32, #tpu.memory_space<vmem>>, vector<8x32xf32>
    %c0_12 = arith.constant 0 : index
    %c0_13 = arith.constant 0 : index
    %12 = vector.load %arg13[%c0_12, %c0_13] : memref<8x32xf32, #tpu.memory_space<vmem>>, vector<8x32xf32>
    %c0_i32_14 = arith.constant 0 : i32
    %c8_i32 = arith.constant 8 : i32
    %13 = arith.muli %c0_i32_14, %c8_i32 : i32
    %14 = tpu.assume_multiple %13, 8 : i32
    %15 = arith.index_cast %14 : i32 to index
    %c0_15 = arith.constant 0 : index
    %16 = vector.load %arg14[%15, %c0_15] : memref<32x128xf32, #tpu.memory_space<vmem>>, vector<8x128xf32>
    %17 = arith.truncf %11 : vector<8x32xf32> to vector<8x32xbf16>
    %c0_16 = arith.constant 0 : index
    %c0_17 = arith.constant 0 : index
    %18 = vector.load %arg4[%c0_16, %c0_17] : memref<32x128xbf16, #tpu.memory_space<vmem>>, vector<32x128xbf16>
    %cst_18 = arith.constant dense<0.000000e+00> : vector<8x128xf32>
    %19 = tpu.matmul %17, %18, %cst_18 {dimension_numbers = #tpu.dot_dimension_numbers<[1], [0], [0], [1], [0, 0, 1, 1], [], []>} : vector<8x32xbf16>, vector<32x128xbf16>, vector<8x128xf32> -> vector<8x128xf32>
    %20 = arith.addf %16, %19 : vector<8x128xf32>
    %21 = vector.extract_strided_slice %20 {offsets = [0, 0], sizes = [8, 32], strides = [1, 1]} : vector<8x128xf32> to vector<8x32xf32>
    %22 = arith.negf %21 : vector<8x32xf32>
    %23 = math.exp %22 : vector<8x32xf32>
    %cst_19 = arith.constant 1.000000e+00 : f32
    %24 = vector.broadcast %cst_19 : f32 to vector<8x32xf32>
    %25 = arith.addf %24, %23 : vector<8x32xf32>
    %26 = arith.divf %24, %25 : vector<8x32xf32>
    %27 = vector.extract_strided_slice %20 {offsets = [0, 32], sizes = [8, 32], strides = [1, 1]} : vector<8x128xf32> to vector<8x32xf32>
    %28 = arith.negf %27 : vector<8x32xf32>
    %29 = math.exp %28 : vector<8x32xf32>
    %cst_20 = arith.constant 1.000000e+00 : f32
    %30 = vector.broadcast %cst_20 : f32 to vector<8x32xf32>
    %31 = arith.addf %30, %29 : vector<8x32xf32>
    %32 = arith.divf %30, %31 : vector<8x32xf32>
    %33 = vector.extract_strided_slice %20 {offsets = [0, 64], sizes = [8, 32], strides = [1, 1]} : vector<8x128xf32> to vector<8x32xf32>
    %34 = math.tanh %33 : vector<8x32xf32>
    %35 = vector.extract_strided_slice %20 {offsets = [0, 96], sizes = [8, 32], strides = [1, 1]} : vector<8x128xf32> to vector<8x32xf32>
    %36 = arith.negf %35 : vector<8x32xf32>
    %37 = math.exp %36 : vector<8x32xf32>
    %cst_21 = arith.constant 1.000000e+00 : f32
    %38 = vector.broadcast %cst_21 : f32 to vector<8x32xf32>
    %39 = arith.addf %38, %37 : vector<8x32xf32>
    %40 = arith.divf %38, %39 : vector<8x32xf32>
    %41 = arith.mulf %32, %12 : vector<8x32xf32>
    %42 = arith.mulf %26, %34 : vector<8x32xf32>
    %43 = arith.addf %41, %42 : vector<8x32xf32>
    %44 = math.tanh %43 : vector<8x32xf32>
    %45 = arith.mulf %40, %44 : vector<8x32xf32>
    %c1_i32 = arith.constant 1 : i32
    %c8_i32_22 = arith.constant 8 : i32
    %46 = arith.muli %c1_i32, %c8_i32_22 : i32
    %47 = tpu.assume_multiple %46, 8 : i32
    %48 = arith.index_cast %47 : i32 to index
    %c0_23 = arith.constant 0 : index
    %49 = vector.load %arg14[%48, %c0_23] : memref<32x128xf32, #tpu.memory_space<vmem>>, vector<8x128xf32>
    %50 = arith.truncf %45 : vector<8x32xf32> to vector<8x32xbf16>
    %c0_24 = arith.constant 0 : index
    %c0_25 = arith.constant 0 : index
    %51 = vector.load %arg4[%c0_24, %c0_25] : memref<32x128xbf16, #tpu.memory_space<vmem>>, vector<32x128xbf16>
    %cst_26 = arith.constant dense<0.000000e+00> : vector<8x128xf32>
    %52 = tpu.matmul %50, %51, %cst_26 {dimension_numbers = #tpu.dot_dimension_numbers<[1], [0], [0], [1], [0, 0, 1, 1], [], []>} : vector<8x32xbf16>, vector<32x128xbf16>, vector<8x128xf32> -> vector<8x128xf32>
    %53 = arith.addf %49, %52 : vector<8x128xf32>
    %54 = vector.extract_strided_slice %53 {offsets = [0, 0], sizes = [8, 32], strides = [1, 1]} : vector<8x128xf32> to vector<8x32xf32>
    %55 = arith.negf %54 : vector<8x32xf32>
    %56 = math.exp %55 : vector<8x32xf32>
    %cst_27 = arith.constant 1.000000e+00 : f32
    %57 = vector.broadcast %cst_27 : f32 to vector<8x32xf32>
    %58 = arith.addf %57, %56 : vector<8x32xf32>
    %59 = arith.divf %57, %58 : vector<8x32xf32>
    %60 = vector.extract_strided_slice %53 {offsets = [0, 32], sizes = [8, 32], strides = [1, 1]} : vector<8x128xf32> to vector<8x32xf32>
    %61 = arith.negf %60 : vector<8x32xf32>
    %62 = math.exp %61 : vector<8x32xf32>
    %cst_28 = arith.constant 1.000000e+00 : f32
    %63 = vector.broadcast %cst_28 : f32 to vector<8x32xf32>
    %64 = arith.addf %63, %62 : vector<8x32xf32>
    %65 = arith.divf %63, %64 : vector<8x32xf32>
    %66 = vector.extract_strided_slice %53 {offsets = [0, 64], sizes = [8, 32], strides = [1, 1]} : vector<8x128xf32> to vector<8x32xf32>
    %67 = math.tanh %66 : vector<8x32xf32>
    %68 = vector.extract_strided_slice %53 {offsets = [0, 96], sizes = [8, 32], strides = [1, 1]} : vector<8x128xf32> to vector<8x32xf32>
    %69 = arith.negf %68 : vector<8x32xf32>
    %70 = math.exp %69 : vector<8x32xf32>
    %cst_29 = arith.constant 1.000000e+00 : f32
    %71 = vector.broadcast %cst_29 : f32 to vector<8x32xf32>
    %72 = arith.addf %71, %70 : vector<8x32xf32>
    %73 = arith.divf %71, %72 : vector<8x32xf32>
    %74 = arith.mulf %65, %43 : vector<8x32xf32>
    %75 = arith.mulf %59, %67 : vector<8x32xf32>
    %76 = arith.addf %74, %75 : vector<8x32xf32>
    %77 = math.tanh %76 : vector<8x32xf32>
    %78 = arith.mulf %73, %77 : vector<8x32xf32>
    %c2_i32 = arith.constant 2 : i32
    %c8_i32_30 = arith.constant 8 : i32
    %79 = arith.muli %c2_i32, %c8_i32_30 : i32
    %80 = tpu.assume_multiple %79, 8 : i32
    %81 = arith.index_cast %80 : i32 to index
    %c0_31 = arith.constant 0 : index
    %82 = vector.load %arg14[%81, %c0_31] : memref<32x128xf32, #tpu.memory_space<vmem>>, vector<8x128xf32>
    %83 = arith.truncf %78 : vector<8x32xf32> to vector<8x32xbf16>
    %c0_32 = arith.constant 0 : index
    %c0_33 = arith.constant 0 : index
    %84 = vector.load %arg4[%c0_32, %c0_33] : memref<32x128xbf16, #tpu.memory_space<vmem>>, vector<32x128xbf16>
    %cst_34 = arith.constant dense<0.000000e+00> : vector<8x128xf32>
    %85 = tpu.matmul %83, %84, %cst_34 {dimension_numbers = #tpu.dot_dimension_numbers<[1], [0], [0], [1], [0, 0, 1, 1], [], []>} : vector<8x32xbf16>, vector<32x128xbf16>, vector<8x128xf32> -> vector<8x128xf32>
    %86 = arith.addf %82, %85 : vector<8x128xf32>
    %87 = vector.extract_strided_slice %86 {offsets = [0, 0], sizes = [8, 32], strides = [1, 1]} : vector<8x128xf32> to vector<8x32xf32>
    %88 = arith.negf %87 : vector<8x32xf32>
    %89 = math.exp %88 : vector<8x32xf32>
    %cst_35 = arith.constant 1.000000e+00 : f32
    %90 = vector.broadcast %cst_35 : f32 to vector<8x32xf32>
    %91 = arith.addf %90, %89 : vector<8x32xf32>
    %92 = arith.divf %90, %91 : vector<8x32xf32>
    %93 = vector.extract_strided_slice %86 {offsets = [0, 32], sizes = [8, 32], strides = [1, 1]} : vector<8x128xf32> to vector<8x32xf32>
    %94 = arith.negf %93 : vector<8x32xf32>
    %95 = math.exp %94 : vector<8x32xf32>
    %cst_36 = arith.constant 1.000000e+00 : f32
    %96 = vector.broadcast %cst_36 : f32 to vector<8x32xf32>
    %97 = arith.addf %96, %95 : vector<8x32xf32>
    %98 = arith.divf %96, %97 : vector<8x32xf32>
    %99 = vector.extract_strided_slice %86 {offsets = [0, 64], sizes = [8, 32], strides = [1, 1]} : vector<8x128xf32> to vector<8x32xf32>
    %100 = math.tanh %99 : vector<8x32xf32>
    %101 = vector.extract_strided_slice %86 {offsets = [0, 96], sizes = [8, 32], strides = [1, 1]} : vector<8x128xf32> to vector<8x32xf32>
    %102 = arith.negf %101 : vector<8x32xf32>
    %103 = math.exp %102 : vector<8x32xf32>
    %cst_37 = arith.constant 1.000000e+00 : f32
    %104 = vector.broadcast %cst_37 : f32 to vector<8x32xf32>
    %105 = arith.addf %104, %103 : vector<8x32xf32>
    %106 = arith.divf %104, %105 : vector<8x32xf32>
    %107 = arith.mulf %98, %76 : vector<8x32xf32>
    %108 = arith.mulf %92, %100 : vector<8x32xf32>
    %109 = arith.addf %107, %108 : vector<8x32xf32>
    %110 = math.tanh %109 : vector<8x32xf32>
    %111 = arith.mulf %106, %110 : vector<8x32xf32>
    %c3_i32 = arith.constant 3 : i32
    %c8_i32_38 = arith.constant 8 : i32
    %112 = arith.muli %c3_i32, %c8_i32_38 : i32
    %113 = tpu.assume_multiple %112, 8 : i32
    %114 = arith.index_cast %113 : i32 to index
    %c0_39 = arith.constant 0 : index
    %115 = vector.load %arg14[%114, %c0_39] : memref<32x128xf32, #tpu.memory_space<vmem>>, vector<8x128xf32>
    %116 = arith.truncf %111 : vector<8x32xf32> to vector<8x32xbf16>
    %c0_40 = arith.constant 0 : index
    %c0_41 = arith.constant 0 : index
    %117 = vector.load %arg4[%c0_40, %c0_41] : memref<32x128xbf16, #tpu.memory_space<vmem>>, vector<32x128xbf16>
    %cst_42 = arith.constant dense<0.000000e+00> : vector<8x128xf32>
    %118 = tpu.matmul %116, %117, %cst_42 {dimension_numbers = #tpu.dot_dimension_numbers<[1], [0], [0], [1], [0, 0, 1, 1], [], []>} : vector<8x32xbf16>, vector<32x128xbf16>, vector<8x128xf32> -> vector<8x128xf32>
    %119 = arith.addf %115, %118 : vector<8x128xf32>
    %120 = vector.extract_strided_slice %119 {offsets = [0, 0], sizes = [8, 32], strides = [1, 1]} : vector<8x128xf32> to vector<8x32xf32>
    %121 = arith.negf %120 : vector<8x32xf32>
    %122 = math.exp %121 : vector<8x32xf32>
    %cst_43 = arith.constant 1.000000e+00 : f32
    %123 = vector.broadcast %cst_43 : f32 to vector<8x32xf32>
    %124 = arith.addf %123, %122 : vector<8x32xf32>
    %125 = arith.divf %123, %124 : vector<8x32xf32>
    %126 = vector.extract_strided_slice %119 {offsets = [0, 32], sizes = [8, 32], strides = [1, 1]} : vector<8x128xf32> to vector<8x32xf32>
    %127 = arith.negf %126 : vector<8x32xf32>
    %128 = math.exp %127 : vector<8x32xf32>
    %cst_44 = arith.constant 1.000000e+00 : f32
    %129 = vector.broadcast %cst_44 : f32 to vector<8x32xf32>
    %130 = arith.addf %129, %128 : vector<8x32xf32>
    %131 = arith.divf %129, %130 : vector<8x32xf32>
    %132 = vector.extract_strided_slice %119 {offsets = [0, 64], sizes = [8, 32], strides = [1, 1]} : vector<8x128xf32> to vector<8x32xf32>
    %133 = math.tanh %132 : vector<8x32xf32>
    %134 = vector.extract_strided_slice %119 {offsets = [0, 96], sizes = [8, 32], strides = [1, 1]} : vector<8x128xf32> to vector<8x32xf32>
    %135 = arith.negf %134 : vector<8x32xf32>
    %136 = math.exp %135 : vector<8x32xf32>
    %cst_45 = arith.constant 1.000000e+00 : f32
    %137 = vector.broadcast %cst_45 : f32 to vector<8x32xf32>
    %138 = arith.addf %137, %136 : vector<8x32xf32>
    %139 = arith.divf %137, %138 : vector<8x32xf32>
    %140 = arith.mulf %131, %109 : vector<8x32xf32>
    %141 = arith.mulf %125, %133 : vector<8x32xf32>
    %142 = arith.addf %140, %141 : vector<8x32xf32>
    %143 = math.tanh %142 : vector<8x32xf32>
    %144 = arith.mulf %139, %143 : vector<8x32xf32>
    %c4_i32 = arith.constant 4 : i32
    %c0_46 = arith.constant 0 : index
    %c0_47 = arith.constant 0 : index
    %145 = vector.load %arg12[%c0_46, %c0_47] : memref<8x32xf32, #tpu.memory_space<vmem>>, vector<8x32xf32>
    tpu.vector_store %arg12[%c0_46, %c0_47], %144 {strides = array<i32>} : memref<8x32xf32, #tpu.memory_space<vmem>>, vector<8x32xf32>,
    %c0_48 = arith.constant 0 : index
    %c0_49 = arith.constant 0 : index
    %146 = vector.load %arg13[%c0_48, %c0_49] : memref<8x32xf32, #tpu.memory_space<vmem>>, vector<8x32xf32>
    tpu.vector_store %arg13[%c0_48, %c0_49], %142 {strides = array<i32>} : memref<8x32xf32, #tpu.memory_space<vmem>>, vector<8x32xf32>,
    %c1_i32_50 = arith.constant 1 : i32
    %147 = arith.cmpi eq, %arg1, %c1_i32_50 : i32
    %148 = arith.extui %147 : i1 to i32
    %c0_i32_51 = arith.constant 0 : i32
    %149 = arith.cmpi ne, %148, %c0_i32_51 : i32
    scf.if %149 {
      %c0_52 = arith.constant 0 : index
      %c0_53 = arith.constant 0 : index
      %c24 = arith.constant 24 : index
      %c0_54 = arith.constant 0 : index
      %150 = vector.load %arg2[%c0_52, %c0_53, %c24, %c0_54] : memref<1x1x32x16xbf16, #tpu.memory_space<vmem>>, vector<1x1x8x16xbf16>
      %151 = vector.shape_cast %150 : vector<1x1x8x16xbf16> to vector<8x16xbf16>
      %c0_55 = arith.constant 0 : index
      %c0_56 = arith.constant 0 : index
      %152 = vector.load %arg6[%c0_55, %c0_56] : memref<16x128xbf16, #tpu.memory_space<vmem>>, vector<16x128xbf16>
      %cst_57 = arith.constant dense<0.000000e+00> : vector<8x128xf32>
      %153 = tpu.matmul %151, %152, %cst_57 {dimension_numbers = #tpu.dot_dimension_numbers<[1], [0], [0], [1], [0, 0, 1, 1], [], []>} : vector<8x16xbf16>, vector<16x128xbf16>, vector<8x128xf32> -> vector<8x128xf32>
      %c0_58 = arith.constant 0 : index
      %c0_59 = arith.constant 0 : index
      %154 = vector.load %arg7[%c0_58, %c0_59] : memref<1x128xf32, #tpu.memory_space<vmem>>, vector<1x128xf32>
      %155 = vector.broadcast %154 : vector<1x128xf32> to vector<8x128xf32>
      %156 = arith.addf %153, %155 : vector<8x128xf32>
      %157 = vector.extract_strided_slice %156 {offsets = [0, 0], sizes = [8, 32], strides = [1, 1]} : vector<8x128xf32> to vector<8x32xf32>
      %158 = arith.negf %157 : vector<8x32xf32>
      %159 = math.exp %158 : vector<8x32xf32>
      %cst_60 = arith.constant 1.000000e+00 : f32
      %160 = vector.broadcast %cst_60 : f32 to vector<8x32xf32>
      %161 = arith.addf %160, %159 : vector<8x32xf32>
      %162 = arith.divf %160, %161 : vector<8x32xf32>
      %163 = vector.extract_strided_slice %156 {offsets = [0, 64], sizes = [8, 32], strides = [1, 1]} : vector<8x128xf32> to vector<8x32xf32>
      %164 = math.tanh %163 : vector<8x32xf32>
      %165 = vector.extract_strided_slice %156 {offsets = [0, 96], sizes = [8, 32], strides = [1, 1]} : vector<8x128xf32> to vector<8x32xf32>
      %166 = arith.negf %165 : vector<8x32xf32>
      %167 = math.exp %166 : vector<8x32xf32>
      %cst_61 = arith.constant 1.000000e+00 : f32
      %168 = vector.broadcast %cst_61 : f32 to vector<8x32xf32>
      %169 = arith.addf %168, %167 : vector<8x32xf32>
      %170 = arith.divf %168, %169 : vector<8x32xf32>
      %171 = arith.mulf %162, %164 : vector<8x32xf32>
      %172 = math.tanh %171 : vector<8x32xf32>
      %173 = arith.mulf %170, %172 : vector<8x32xf32>
      %174 = arith.truncf %144 : vector<8x32xf32> to vector<8x32xbf16>
      %c0_62 = arith.constant 0 : index
      %c0_63 = arith.constant 0 : index
      %175 = vector.load %arg8[%c0_62, %c0_63] : memref<32x16xbf16, #tpu.memory_space<vmem>>, vector<32x16xbf16>
      %cst_64 = arith.constant dense<0.000000e+00> : vector<8x16xf32>
      %176 = tpu.matmul %174, %175, %cst_64 {dimension_numbers = #tpu.dot_dimension_numbers<[1], [0], [0], [1], [0, 0, 1, 1], [], []>} : vector<8x32xbf16>, vector<32x16xbf16>, vector<8x16xf32> -> vector<8x16xf32>
      %177 = arith.truncf %173 : vector<8x32xf32> to vector<8x32xbf16>
      %c0_65 = arith.constant 0 : index
      %c0_66 = arith.constant 0 : index
      %178 = vector.load %arg9[%c0_65, %c0_66] : memref<32x16xbf16, #tpu.memory_space<vmem>>, vector<32x16xbf16>
      %cst_67 = arith.constant dense<0.000000e+00> : vector<8x16xf32>
      %179 = tpu.matmul %177, %178, %cst_67 {dimension_numbers = #tpu.dot_dimension_numbers<[1], [0], [0], [1], [0, 0, 1, 1], [], []>} : vector<8x32xbf16>, vector<32x16xbf16>, vector<8x16xf32> -> vector<8x16xf32>
      %180 = arith.addf %176, %179 : vector<8x16xf32>
      %c0_68 = arith.constant 0 : index
      %c0_69 = arith.constant 0 : index
      %181 = vector.load %arg10[%c0_68, %c0_69] : memref<1x16xf32, #tpu.memory_space<vmem>>, vector<1x16xf32>
      %182 = vector.broadcast %181 : vector<1x16xf32> to vector<8x16xf32>
      %183 = arith.addf %180, %182 : vector<8x16xf32>
      %c0_70 = arith.constant 0 : index
      %c0_71 = arith.constant 0 : index
      %184 = vector.load %arg11[%c0_70, %c0_71] : memref<8x16xf32, #tpu.memory_space<vmem>>, vector<8x16xf32>
      tpu.vector_store %arg11[%c0_70, %c0_71], %183 {strides = array<i32>} : memref<8x16xf32, #tpu.memory_space<vmem>>, vector<8x16xf32>,
    } else {
    }
    return
  }
  func.func @transform_0(%arg0: i32, %arg1: i32) -> (i32, i32, i32, i32) {
    %c0_i32 = arith.constant 0 : i32
    %c0_i32_0 = arith.constant 0 : i32
    %c0_i32_1 = arith.constant 0 : i32
    return %arg0, %arg1, %c0_i32, %c0_i32_0 : i32, i32, i32, i32
  }
  func.func @transform_1(%arg0: i32, %arg1: i32) -> (i32, i32) {
    %c0_i32 = arith.constant 0 : i32
    %c0_i32_0 = arith.constant 0 : i32
    %c0_i32_1 = arith.constant 0 : i32
    return %c0_i32, %c0_i32_0 : i32, i32
  }
  func.func @transform_2(%arg0: i32, %arg1: i32) -> (i32, i32) {
    %c0_i32 = arith.constant 0 : i32
    %c0_i32_0 = arith.constant 0 : i32
    %c0_i32_1 = arith.constant 0 : i32
    return %c0_i32, %c0_i32_0 : i32, i32
  }
  func.func @transform_3(%arg0: i32, %arg1: i32) -> (i32, i32) {
    %c0_i32 = arith.constant 0 : i32
    %c0_i32_0 = arith.constant 0 : i32
    %c0_i32_1 = arith.constant 0 : i32
    return %c0_i32, %c0_i32_0 : i32, i32
  }
  func.func @transform_4(%arg0: i32, %arg1: i32) -> (i32, i32) {
    %c0_i32 = arith.constant 0 : i32
    %c0_i32_0 = arith.constant 0 : i32
    %c0_i32_1 = arith.constant 0 : i32
    return %c0_i32, %c0_i32_0 : i32, i32
  }
  func.func @transform_5(%arg0: i32, %arg1: i32) -> (i32, i32) {
    %c0_i32 = arith.constant 0 : i32
    %c0_i32_0 = arith.constant 0 : i32
    %c0_i32_1 = arith.constant 0 : i32
    return %c0_i32, %c0_i32_0 : i32, i32
  }
  func.func @transform_6(%arg0: i32, %arg1: i32) -> (i32, i32) {
    %c0_i32 = arith.constant 0 : i32
    %c0_i32_0 = arith.constant 0 : i32
    %c0_i32_1 = arith.constant 0 : i32
    return %c0_i32, %c0_i32_0 : i32, i32
  }
  func.func @transform_7(%arg0: i32, %arg1: i32) -> (i32, i32) {
    %c0_i32 = arith.constant 0 : i32
    %c0_i32_0 = arith.constant 0 : i32
    %c0_i32_1 = arith.constant 0 : i32
    return %c0_i32, %c0_i32_0 : i32, i32
  }
  func.func @transform_8(%arg0: i32, %arg1: i32) -> (i32, i32) {
    %c0_i32 = arith.constant 0 : i32
    %c0_i32_0 = arith.constant 0 : i32
    %c0_i32_1 = arith.constant 0 : i32
    return %c0_i32, %c0_i32_0 : i32, i32
  }
  func.func @transform_9(%arg0: i32, %arg1: i32) -> (i32, i32) {
    %c0_i32 = arith.constant 0 : i32
    %c0_i32_0 = arith.constant 0 : i32
    return %arg0, %c0_i32 : i32, i32
  }
}

</mosaic_0001>

<llo_original>
// kernel: tpu_custom_call.1
$region0: #{tpu_custom_call.1}
  #allocation0 [shape = 'u32[]', space=smem, size = 0x4, offset = 0x4, fixed_abs, tag = 'smem constant byte address 0x4 - core index']
  #allocation1 [shape = 'u32[144,128]{1,0:T(1,128)}', space=vmem, size = 0x12000, scoped, tag = 'internal scratch']
  #allocation2 [shape = 'f32[8,32]{1,0:T(8,128)}', space=vmem, size = 0x1000, scoped, tag = 'scratch operand']
  #allocation3 [shape = 'f32[8,32]{1,0:T(8,128)}', space=vmem, size = 0x1000, scoped, tag = 'scratch operand']
  #allocation4 [shape = 'f32[32,128]{1,0:T(8,128)}', space=vmem, size = 0x4000, scoped, tag = 'scratch operand']
  %s0 = inlined_call_operand.vmem [shape: bf16[1,2,32,16], index: 0, kind: input, shape index: {}]
  %s1 = inlined_call_operand.vmem [shape: bf16[16,128], index: 1, kind: input, shape index: {}]
  %s2 = inlined_call_operand.vmem [shape: bf16[32,128], index: 2, kind: input, shape index: {}]
  %s3 = inlined_call_operand.vmem [shape: f32[1,128], index: 3, kind: input, shape index: {}]
  %s4 = inlined_call_operand.vmem [shape: bf16[16,128], index: 4, kind: input, shape index: {}]
  %s5 = inlined_call_operand.vmem [shape: f32[1,128], index: 5, kind: input, shape index: {}]
  %s6 = inlined_call_operand.vmem [shape: bf16[32,16], index: 6, kind: input, shape index: {}]
  %s7 = inlined_call_operand.vmem [shape: bf16[32,16], index: 7, kind: input, shape index: {}]
  %s8 = inlined_call_operand.vmem [shape: f32[1,16], index: 8, kind: input, shape index: {}]
  %s9 = inlined_call_operand.hbm [shape: f32[8,16], index: 9, kind: output, shape index: {}]
  %s10 = sld [smem:[#allocation0]]
  $region77: #{tpu_custom_call.1} parent=0
    _
  %s12 = ssub.s32 1, %s10
  %s13 = scalar_select 0, %s12, %s10
  $region1: #{tpu_custom_call.1} parent=0
    #allocation5 [shape = 'u8[4096]{0}', space=vmem, size = 0x1000, scoped, tag = 'output window, operand 0, single buffered']
    #allocation6 [shape = 's32[2]{0}', space=sflag, size = 0x8, scoped, tag = 'scoped memory for tpu_custom_call.1']
    %14 = vsyncpa [#allocation6], 0
    loop: start=0, step=1, limit=4
    $region2: #{tpu_custom_call.1} parent=1 // loop_pre_header
      _
    $region3: #{tpu_custom_call.1} parent=1 // loop_header
      %s16 = sphi 0, %s20
      %p17 = scmp.ge.s32.totalorder %s16, 4
      %s23 = sphi 0, %s35
      %s24 = sphi 0, %s31
      %s25 = sphi 0, %s23
      %s26 = sphi 0, %s24
      %s27 = sphi 0, %s25
      %s28 = sphi 0, %s26
      %s40 = sphi 0, %s42
      %s43 = sphi 0, %s40
      %s44 = sphi 0, %s43
      %s60 = sphi 0, %s44
      %s64 = sphi 0, %s64
      %s66 = sphi 0, %s64
      %s67 = sphi 0, %s66
      %s81 = sphi 0, %s67
      %s85 = sphi 0, %s85
      %s87 = sphi 0, %s85
      %s88 = sphi 0, %s87
      %s102 = sphi 0, %s88
      %s106 = sphi 0, %s106
      %s108 = sphi 0, %s106
      %s109 = sphi 0, %s108
      %s123 = sphi 0, %s109
      %s127 = sphi 0, %s127
      %s129 = sphi 0, %s127
      %s130 = sphi 0, %s129
      %s144 = sphi 0, %s130
      %s148 = sphi 0, %s148
      %s150 = sphi 0, %s148
      %s151 = sphi 0, %s150
      %s165 = sphi 0, %s151
      %s169 = sphi 0, %s169
      %s171 = sphi 0, %s169
      %s172 = sphi 0, %s171
      %s186 = sphi 0, %s172
      %s190 = sphi 0, %s190
      %s192 = sphi 0, %s190
      %s193 = sphi 0, %s192
      %s207 = sphi 0, %s193
      %s211 = sphi 0, %s211
      %s213 = sphi 0, %s211
      %s214 = sphi 0, %s213
      %s228 = sphi 0, %s214
      %s234 = sphi 0, %s236
      %s237 = sphi 0, %s234
      %s238 = sphi 0, %s237
      %s254 = sphi 0, %s238
    $region4: #{tpu_custom_call.1} parent=1 // loop_header_branch
      %19 = sbr.rel (%p17) target = $region8
    $region5: #{tpu_custom_call.1} parent=1 // loop_body
      %s21 = ssub.s32 %s16, 1
      %s22 = ssub.s32 %s16, 2
      %s29 = sadd.s32 1, %s24
      %p30 = scmp.ge.s32.totalorder %s29, 2
      %s31 = scalar_select %p30, 0, %s29
      %s32 = sadd.s32 1, %s23
      %s33 = scalar_select %p30, %s32, %s23
      %p34 = scmp.ge.s32.totalorder %s33, 1
      %s35 = scalar_select %p34, 0, %s33
      %s36 = ssub.s32 %s23, %s35
      %s37 = ssub.s32 %s24, %s31
      %s38 = sor.u32 %s36, %s37
      %p39 = scmp.eq.s32.totalorder %s38, 0
      %s41 = sadd.s32 %s40, 1
      %s42 = scalar_select %p39, %s40, %s41
      %p45 = pneg %p39
      %p46 = scmp.eq.s32.totalorder %s16, 1
      %p47 = por %p45, %p46
      %p48 = scmp.ne.s32.totalorder %s40, %s43
      %p49 = scmp.eq.s32.totalorder %s16, 0
      %p50 = por %p48, %p49
      %p51 = scmp.ne.s32.totalorder %s40, %s43
      %p52 = scmp.eq.s32.totalorder %s21, 1
      %p53 = por %p51, %p52
      %p54 = scmp.ne.s32.totalorder %s43, %s44
      %p55 = scmp.eq.s32.totalorder %s21, 0
      %p56 = por %p54, %p55
      %p57 = scmp.ne.s32.totalorder %s43, %s44
      %p58 = scmp.eq.s32.totalorder %s22, 1
      %p59 = por %p57, %p58
      %p61 = scmp.ne.s32.totalorder %s44, %s60
      %p62 = scmp.eq.s32.totalorder %s22, 0
      %p63 = por %p61, %p62
      %s65 = sadd.s32 %s64, 1
      %p68 = scmp.eq.s32.totalorder %s16, 1
      %p69 = scmp.ne.s32.totalorder %s64, %s66
      %p70 = scmp.eq.s32.totalorder %s16, 0
      %p71 = por %p69, %p70
      %p72 = scmp.ne.s32.totalorder %s64, %s66
      %p73 = scmp.eq.s32.totalorder %s21, 1
      %p74 = por %p72, %p73
      %p75 = scmp.ne.s32.totalorder %s66, %s67
      %p76 = scmp.eq.s32.totalorder %s21, 0
      %p77 = por %p75, %p76
      %p78 = scmp.ne.s32.totalorder %s66, %s67
      %p79 = scmp.eq.s32.totalorder %s22, 1
      %p80 = por %p78, %p79
      %p82 = scmp.ne.s32.totalorder %s67, %s81
      %p83 = scmp.eq.s32.totalorder %s22, 0
      %p84 = por %p82, %p83
      %s86 = sadd.s32 %s85, 1
      %p89 = scmp.eq.s32.totalorder %s16, 1
      %p90 = scmp.ne.s32.totalorder %s85, %s87
      %p91 = scmp.eq.s32.totalorder %s16, 0
      %p92 = por %p90, %p91
      %p93 = scmp.ne.s32.totalorder %s85, %s87
      %p94 = scmp.eq.s32.totalorder %s21, 1
      %p95 = por %p93, %p94
      %p96 = scmp.ne.s32.totalorder %s87, %s88
      %p97 = scmp.eq.s32.totalorder %s21, 0
      %p98 = por %p96, %p97
      %p99 = scmp.ne.s32.totalorder %s87, %s88
      %p100 = scmp.eq.s32.totalorder %s22, 1
      %p101 = por %p99, %p100
      %p103 = scmp.ne.s32.totalorder %s88, %s102
      %p104 = scmp.eq.s32.totalorder %s22, 0
      %p105 = por %p103, %p104
      %s107 = sadd.s32 %s106, 1
      %p110 = scmp.eq.s32.totalorder %s16, 1
      %p111 = scmp.ne.s32.totalorder %s106, %s108
      %p112 = scmp.eq.s32.totalorder %s16, 0
      %p113 = por %p111, %p112
      %p114 = scmp.ne.s32.totalorder %s106, %s108
      %p115 = scmp.eq.s32.totalorder %s21, 1
      %p116 = por %p114, %p115
      %p117 = scmp.ne.s32.totalorder %s108, %s109
      %p118 = scmp.eq.s32.totalorder %s21, 0
      %p119 = por %p117, %p118
      %p120 = scmp.ne.s32.totalorder %s108, %s109
      %p121 = scmp.eq.s32.totalorder %s22, 1
      %p122 = por %p120, %p121
      %p124 = scmp.ne.s32.totalorder %s109, %s123
      %p125 = scmp.eq.s32.totalorder %s22, 0
      %p126 = por %p124, %p125
      %s128 = sadd.s32 %s127, 1
      %p131 = scmp.eq.s32.totalorder %s16, 1
      %p132 = scmp.ne.s32.totalorder %s127, %s129
      %p133 = scmp.eq.s32.totalorder %s16, 0
      %p134 = por %p132, %p133
      %p135 = scmp.ne.s32.totalorder %s127, %s129
      %p136 = scmp.eq.s32.totalorder %s21, 1
      %p137 = por %p135, %p136
      %p138 = scmp.ne.s32.totalorder %s129, %s130
      %p139 = scmp.eq.s32.totalorder %s21, 0
      %p140 = por %p138, %p139
      %p141 = scmp.ne.s32.totalorder %s129, %s130
      %p142 = scmp.eq.s32.totalorder %s22, 1
      %p143 = por %p141, %p142
      %p145 = scmp.ne.s32.totalorder %s130, %s144
      %p146 = scmp.eq.s32.totalorder %s22, 0
      %p147 = por %p145, %p146
      %s149 = sadd.s32 %s148, 1
      %p152 = scmp.eq.s32.totalorder %s16, 1
      %p153 = scmp.ne.s32.totalorder %s148, %s150
      %p154 = scmp.eq.s32.totalorder %s16, 0
      %p155 = por %p153, %p154
      %p156 = scmp.ne.s32.totalorder %s148, %s150
      %p157 = scmp.eq.s32.totalorder %s21, 1
      %p158 = por %p156, %p157
      %p159 = scmp.ne.s32.totalorder %s150, %s151
      %p160 = scmp.eq.s32.totalorder %s21, 0
      %p161 = por %p159, %p160
      %p162 = scmp.ne.s32.totalorder %s150, %s151
      %p163 = scmp.eq.s32.totalorder %s22, 1
      %p164 = por %p162, %p163
      %p166 = scmp.ne.s32.totalorder %s151, %s165
      %p167 = scmp.eq.s32.totalorder %s22, 0
      %p168 = por %p166, %p167
      %s170 = sadd.s32 %s169, 1
      %p173 = scmp.eq.s32.totalorder %s16, 1
      %p174 = scmp.ne.s32.totalorder %s169, %s171
      %p175 = scmp.eq.s32.totalorder %s16, 0
      %p176 = por %p174, %p175
      %p177 = scmp.ne.s32.totalorder %s169, %s171
      %p178 = scmp.eq.s32.totalorder %s21, 1
      %p179 = por %p177, %p178
      %p180 = scmp.ne.s32.totalorder %s171, %s172
      %p181 = scmp.eq.s32.totalorder %s21, 0
      %p182 = por %p180, %p181
      %p183 = scmp.ne.s32.totalorder %s171, %s172
      %p184 = scmp.eq.s32.totalorder %s22, 1
      %p185 = por %p183, %p184
      %p187 = scmp.ne.s32.totalorder %s172, %s186
      %p188 = scmp.eq.s32.totalorder %s22, 0
      %p189 = por %p187, %p188
      %s191 = sadd.s32 %s190, 1
      %p194 = scmp.eq.s32.totalorder %s16, 1
      %p195 = scmp.ne.s32.totalorder %s190, %s192
      %p196 = scmp.eq.s32.totalorder %s16, 0
      %p197 = por %p195, %p196
      %p198 = scmp.ne.s32.totalorder %s190, %s192
      %p199 = scmp.eq.s32.totalorder %s21, 1
      %p200 = por %p198, %p199
      %p201 = scmp.ne.s32.totalorder %s192, %s193
      %p202 = scmp.eq.s32.totalorder %s21, 0
      %p203 = por %p201, %p202
      %p204 = scmp.ne.s32.totalorder %s192, %s193
      %p205 = scmp.eq.s32.totalorder %s22, 1
      %p206 = por %p204, %p205
      %p208 = scmp.ne.s32.totalorder %s193, %s207
      %p209 = scmp.eq.s32.totalorder %s22, 0
      %p210 = por %p208, %p209
      %s212 = sadd.s32 %s211, 1
      %p215 = scmp.eq.s32.totalorder %s16, 1
      %p216 = scmp.ne.s32.totalorder %s211, %s213
      %p217 = scmp.eq.s32.totalorder %s16, 0
      %p218 = por %p216, %p217
      %p219 = scmp.ne.s32.totalorder %s211, %s213
      %p220 = scmp.eq.s32.totalorder %s21, 1
      %p221 = por %p219, %p220
      %p222 = scmp.ne.s32.totalorder %s213, %s214
      %p223 = scmp.eq.s32.totalorder %s21, 0
      %p224 = por %p222, %p223
      %p225 = scmp.ne.s32.totalorder %s213, %s214
      %p226 = scmp.eq.s32.totalorder %s22, 1
      %p227 = por %p225, %p226
      %p229 = scmp.ne.s32.totalorder %s214, %s228
      %p230 = scmp.eq.s32.totalorder %s22, 0
      %p231 = por %p229, %p230
      %s232 = ssub.s32 %s23, %s35
      %p233 = scmp.eq.s32.totalorder %s232, 0
      %s235 = sadd.s32 %s234, 1
      %s236 = scalar_select %p233, %s234, %s235
      %p239 = pneg %p233
      %p240 = scmp.eq.s32.totalorder %s16, 1
      %p241 = por %p239, %p240
      %p242 = scmp.ne.s32.totalorder %s234, %s237
      %p243 = scmp.eq.s32.totalorder %s16, 0
      %p244 = por %p242, %p243
      %p245 = scmp.ne.s32.totalorder %s234, %s237
      %p246 = scmp.eq.s32.totalorder %s21, 1
      %p247 = por %p245, %p246
      %p248 = scmp.ne.s32.totalorder %s237, %s238
      %p249 = scmp.eq.s32.totalorder %s21, 0
      %p250 = por %p248, %p249
      %p251 = scmp.ne.s32.totalorder %s237, %s238
      %p252 = scmp.eq.s32.totalorder %s22, 1
      %p253 = por %p251, %p252
      %p255 = scmp.ne.s32.totalorder %s238, %s254
      %p256 = scmp.eq.s32.totalorder %s22, 0
      %p257 = por %p255, %p256
      %p258 = scmp.le.s32.totalorder 1, %s16
      %p259 = scmp.lt.s32.totalorder %s16, 3
      %p260 = pnand %p258, %p259
      %p261 = pneg %p260
      // Predicated region
      $region9: #{tpu_custom_call.1} parent=5 // pred_check
        _
      $region10: #{tpu_custom_call.1} parent=5 // pred_check_branch
        %263 = sbr.rel (%p260) target = $region12
      $region11: #{tpu_custom_call.1} parent=5 // pred_region
        %s264 = ssub.s32 %s16, 1
        // Predicated region
        $region13: #{tpu_custom_call.1} parent=11 // pred_check
          %p265 = pneg %p77
        $region14: #{tpu_custom_call.1} parent=11 // pred_check_branch
          %267 = sbr.rel (%p265) target = $region16
        $region15: #{tpu_custom_call.1} parent=11 // pred_region
          _
        $region16: #{tpu_custom_call.1} parent=11 // pred_fallthru
          _
        // Predicated region
        $region17: #{tpu_custom_call.1} parent=11 // pred_check
          %p268 = pneg %p98
        $region18: #{tpu_custom_call.1} parent=11 // pred_check_branch
          %270 = sbr.rel (%p268) target = $region20
        $region19: #{tpu_custom_call.1} parent=11 // pred_region
          _
        $region20: #{tpu_custom_call.1} parent=11 // pred_fallthru
          _
        // Predicated region
        $region21: #{tpu_custom_call.1} parent=11 // pred_check
          %p271 = pneg %p119
        $region22: #{tpu_custom_call.1} parent=11 // pred_check_branch
          %273 = sbr.rel (%p271) target = $region24
        $region23: #{tpu_custom_call.1} parent=11 // pred_region
          _
        $region24: #{tpu_custom_call.1} parent=11 // pred_fallthru
          _
        // Predicated region
        $region25: #{tpu_custom_call.1} parent=11 // pred_check
          %p274 = pneg %p140
        $region26: #{tpu_custom_call.1} parent=11 // pred_check_branch
          %276 = sbr.rel (%p274) target = $region28
        $region27: #{tpu_custom_call.1} parent=11 // pred_region
          _
        $region28: #{tpu_custom_call.1} parent=11 // pred_fallthru
          _
        // Predicated region
        $region29: #{tpu_custom_call.1} parent=11 // pred_check
          %p277 = pneg %p161
        $region30: #{tpu_custom_call.1} parent=11 // pred_check_branch
          %279 = sbr.rel (%p277) target = $region32
        $region31: #{tpu_custom_call.1} parent=11 // pred_region
          _
        $region32: #{tpu_custom_call.1} parent=11 // pred_fallthru
          _
        // Predicated region
        $region33: #{tpu_custom_call.1} parent=11 // pred_check
          %p280 = pneg %p182
        $region34: #{tpu_custom_call.1} parent=11 // pred_check_branch
          %282 = sbr.rel (%p280) target = $region36
        $region35: #{tpu_custom_call.1} parent=11 // pred_region
          _
        $region36: #{tpu_custom_call.1} parent=11 // pred_fallthru
          _
        // Predicated region
        $region37: #{tpu_custom_call.1} parent=11 // pred_check
          %p283 = pneg %p203
        $region38: #{tpu_custom_call.1} parent=11 // pred_check_branch
          %285 = sbr.rel (%p283) target = $region40
        $region39: #{tpu_custom_call.1} parent=11 // pred_region
          _
        $region40: #{tpu_custom_call.1} parent=11 // pred_fallthru
          _
        // Predicated region
        $region41: #{tpu_custom_call.1} parent=11 // pred_check
          %p286 = pneg %p224
        $region42: #{tpu_custom_call.1} parent=11 // pred_check_branch
          %288 = sbr.rel (%p286) target = $region44
        $region43: #{tpu_custom_call.1} parent=11 // pred_region
          _
        $region44: #{tpu_custom_call.1} parent=11 // pred_fallthru
          _
      $region12: #{tpu_custom_call.1} parent=5 // pred_fallthru
        _
      %p289 = scmp.lt.s32.totalorder %s16, 2
      // Predicated region
      $region45: #{tpu_custom_call.1} parent=5 // pred_check
        %p290 = pneg %p289
      $region46: #{tpu_custom_call.1} parent=5 // pred_check_branch
        %292 = sbr.rel (%p290) target = $region48
      $region47: #{tpu_custom_call.1} parent=5 // pred_region
        // Predicated region
        $region49: #{tpu_custom_call.1} parent=47 // pred_check
          %p293 = pneg %p50
        $region50: #{tpu_custom_call.1} parent=47 // pred_check_branch
          %295 = sbr.rel (%p293) target = $region52
        $region51: #{tpu_custom_call.1} parent=47 // pred_region
          %p296 = scmp.lt.s32.totalorder %s23, 0
          %s297 = scalar_select %p296, %s23, 0
          %p298 = scmp.lt.s32.totalorder %s24, 1
          %s299 = scalar_select %p298, %s24, 1
          %s300 = smul.addr %s299, 4
          %s301 = smul.addr %s297, 8
          %s302 = sadd.s32 %s300, %s301
          %s303 = smul.addr %s302, 4
          %s304 = scalar_lea.vmem %s0, %s303
        $region52: #{tpu_custom_call.1} parent=47 // pred_fallthru
          _
      $region48: #{tpu_custom_call.1} parent=5 // pred_fallthru
        _
      %p305 = scmp.le.s32.totalorder 1, %s16
      %p306 = scmp.lt.s32.totalorder %s16, 3
      %p307 = pnand %p305, %p306
      %p308 = pneg %p307
      // Predicated region
      $region53: #{tpu_custom_call.1} parent=5 // pred_check
        _
      $region54: #{tpu_custom_call.1} parent=5 // pred_check_branch
        %310 = sbr.rel (%p307) target = $region56
      $region55: #{tpu_custom_call.1} parent=5 // pred_region
        %s311 = ssub.s32 %s16, 1
        %p312 = scmp.lt.s32.totalorder %s25, 0
        %s313 = scalar_select %p312, %s25, 0
        %p314 = scmp.lt.s32.totalorder %s26, 1
        %s315 = scalar_select %p314, %s26, 1
        %s316 = smul.addr %s315, 4
        %s317 = smul.addr %s313, 8
        %s318 = sadd.s32 %s316, %s317
        %s319 = smul.addr %s318, 4
        %s320 = scalar_lea.vmem %s0, %s319
        %p321 = pneg %p56
        %p322 = pneg %p53
        %p323 = pneg %p77
        %p324 = pneg %p74
        %p325 = pneg %p98
        %p326 = pneg %p95
        %p327 = pneg %p119
        %p328 = pneg %p116
        %p329 = pneg %p140
        %p330 = pneg %p137
        %p331 = pneg %p161
        %p332 = pneg %p158
        %p333 = pneg %p182
        %p334 = pneg %p179
        %p335 = pneg %p203
        %p336 = pneg %p200
        %p337 = pneg %p224
        %p338 = pneg %p221
        %p339 = pneg %p250
        %p340 = pneg %p247
        %p341 = scmp.lt.s32.totalorder %s25, 0
        %s342 = scalar_select %p341, %s25, 0
        %p343 = scmp.lt.s32.totalorder %s26, 1
        %s344 = scalar_select %p343, %s26, 1
        %s345 = smul.addr %s344, 4
        %s346 = smul.addr %s342, 8
        %s347 = sadd.s32 %s345, %s346
        %s348 = smul.addr %s347, 4
        %s349 = scalar_lea.vmem %s0, %s348
        %p351 = scmp.eq.s32.totalorder %s26, 0
        // Predicated region
        $region57: #{tpu_custom_call.1} parent=55 // pred_check
          %p352 = pneg %p351
        $region58: #{tpu_custom_call.1} parent=55 // pred_check_branch
          %354 = sbr.rel (%p352) target = $region60
        $region59: #{tpu_custom_call.1} parent=55 // pred_region
          %vm355 = vcmask 261120
          %356 = vst.msk [vmem:[#allocation2] sm:$0xff] %vm355, 0.0
          %357 = vst.msk [vmem:[#allocation3] sm:$0xff] %vm355, 0.0
        $region60: #{tpu_custom_call.1} parent=55 // pred_fallthru
          _
        %v358 = vld [vmem:[%s349] sm:$0xf]
        %v359 = vld [vmem:[%s349 + $0x4] sm:$0xf]
        %v360 = vld [vmem:[%s349 + $0x8] sm:$0xf]
        %v361 = vld [vmem:[%s349 + $0xc] sm:$0xf]
        %v362 = vld [vmem:[%s1] sm:$0xf]
        %v363 = vld [vmem:[%s1 + $0x4] sm:$0xf]
        %v364 = vld [vmem:[%s3] sm:$0x1]
        %v366 = vlaneseq
        %v367 = vshrl.u32 %v366, 7
        %v368 = vsub.s32 0, %v367
        %v369 = vrot.slane %v364, %v368
        %v375 = vunpack.c.l.b16 %v358
        %v376 = vunpack.c.l.b16 %v359
        %v377 = vunpack.c.l.b16 %v360
        %v378 = vunpack.c.l.b16 %v361
        %v379 = vpack.c.b16 %v376, %v375
        %v380 = vpack.c.b16 %v378, %v377
        %v383 = vunpack.c.l.b16 %v362
        %v384 = vunpack.c.l.b16 %v363
        %v385 = vpack.c.b16 %v384, %v383
        %vm387 = vcmask 130048
        %v389 = vsel %vm387, %v379, 0
        %v392 = vsel %vm387, %v380, 0
        %394 = vmatprep.subr.bf16.mxu0 0
        %395 = vmatpush1.bf16.msra.mxu0 %v385
        %396 = vmatprep.subr.bf16.mxu0 0
        %397 = vmatpush1.bf16.msra.mxu0 0
        %398 = vmatprep.subr.bf16.mxu0 0
        %399 = vmatpush1.bf16.msra.mxu0 0
        %400 = vmatprep.subr.bf16.mxu0 0
        %401 = vmatpush1.bf16.msra.mxu0 0
        %402 = vmatprep.subr.bf16.mxu0 0
        %403 = vmatpush1.bf16.msra.mxu0 0
        %404 = vmatprep.subr.bf16.mxu0 0
        %405 = vmatpush1.bf16.msra.mxu0 0
        %406 = vmatprep.subr.bf16.mxu0 0
        %407 = vmatpush1.bf16.msra.mxu0 0
        %408 = vmatprep.subr.bf16.mxu0 0
        %409 = vmatpush1.bf16.msra.mxu0 0
        %410 = vmatprep.subr.bf16.mxu0 0
        %411 = vmatpush1.bf16.msra.mxu0 0
        %412 = vmatprep.subr.bf16.mxu0 0
        %413 = vmatpush1.bf16.msra.mxu0 0
        %414 = vmatprep.subr.bf16.mxu0 0
        %415 = vmatpush1.bf16.msra.mxu0 0
        %416 = vmatprep.subr.bf16.mxu0 0
        %417 = vmatpush1.bf16.msra.mxu0 0
        %418 = vmatprep.subr.bf16.mxu0 0
        %419 = vmatpush1.bf16.msra.mxu0 0
        %420 = vmatprep.subr.bf16.mxu0 0
        %421 = vmatpush1.bf16.msra.mxu0 0
        %422 = vmatprep.subr.bf16.mxu0 0
        %423 = vmatpush1.bf16.msra.mxu0 0
        %424 = vmatprep.subr.bf16.mxu0 0
        %425 = vmatpush1.bf16.msra.mxu0 0
        %426 = vmatprep.mubr.bf16.mxu0 0
        %427 = vmatmul.mubr.bf16.gmra.mrb[0].mxu0 %v389
        %v428 = vpop.f32.mrb[0].mxu0
        %v429 = vadd.f32 %v369, %v428
        %v430 = vpop.f32.mrb[0].mxu0
        %v431 = vpop.f32.mrb[0].mxu0
        %v432 = vadd.f32 %v369, %v431
        %v433 = vpop.f32.mrb[0].mxu0
        %434 = vmatprep.mubr.bf16.mxu0 0
        %435 = vmatmul.mubr.bf16.gmra.mrb[0].mxu0 %v392
        %v436 = vpop.f32.mrb[0].mxu0
        %v437 = vadd.f32 %v369, %v436
        %v438 = vpop.f32.mrb[0].mxu0
        %v439 = vpop.f32.mrb[0].mxu0
        %v440 = vadd.f32 %v369, %v439
        %v441 = vpop.f32.mrb[0].mxu0
        %442 = vdwg.mxu0
        %443 = vst [vmem:[#allocation4] sm:$0xff] %v429
        %444 = vst [vmem:[#allocation4 + $0x8] sm:$0xff] %v432
        %445 = vst [vmem:[#allocation4 + $0x10] sm:$0xff] %v437
        %446 = vst [vmem:[#allocation4 + $0x18] sm:$0xff] %v440
        %v447 = vld [vmem:[#allocation2] sm:$0xff]
        %v448 = vld [vmem:[#allocation3] sm:$0xff]
        %v449 = vld [vmem:[#allocation4] sm:$0xff]
        %v450 = vpack.c.bf16 %v447, %v447
        %v451 = vld [vmem:[%s2] sm:$0xf]
        %v452 = vld [vmem:[%s2 + $0x4] sm:$0xf]
        %v453 = vld [vmem:[%s2 + $0x8] sm:$0xf]
        %v454 = vld [vmem:[%s2 + $0xc] sm:$0xf]
        %v459 = vunpack.c.l.b16 %v451
        %v460 = vunpack.c.l.b16 %v452
        %v461 = vunpack.c.l.b16 %v453
        %v462 = vunpack.c.l.b16 %v454
        %v463 = vpack.c.b16 %v460, %v459
        %v464 = vpack.c.b16 %v462, %v461
        %vm467 = vcmask 261120
        %v469 = vsel %vm467, %v450, 0
        %471 = vmatprep.subr.bf16.mxu0 0
        %472 = vmatpush1.bf16.msra.mxu0 %v463
        %473 = vmatprep.subr.bf16.mxu0 0
        %474 = vmatpush1.bf16.msra.mxu0 %v464
        %475 = vmatprep.subr.bf16.mxu0 0
        %476 = vmatpush1.bf16.msra.mxu0 0
        %477 = vmatprep.subr.bf16.mxu0 0
        %478 = vmatpush1.bf16.msra.mxu0 0
        %479 = vmatprep.subr.bf16.mxu0 0
        %480 = vmatpush1.bf16.msra.mxu0 0
        %481 = vmatprep.subr.bf16.mxu0 0
        %482 = vmatpush1.bf16.msra.mxu0 0
        %483 = vmatprep.subr.bf16.mxu0 0
        %484 = vmatpush1.bf16.msra.mxu0 0
        %485 = vmatprep.subr.bf16.mxu0 0
        %486 = vmatpush1.bf16.msra.mxu0 0
        %487 = vmatprep.subr.bf16.mxu0 0
        %488 = vmatpush1.bf16.msra.mxu0 0
        %489 = vmatprep.subr.bf16.mxu0 0
        %490 = vmatpush1.bf16.msra.mxu0 0
        %491 = vmatprep.subr.bf16.mxu0 0
        %492 = vmatpush1.bf16.msra.mxu0 0
        %493 = vmatprep.subr.bf16.mxu0 0
        %494 = vmatpush1.bf16.msra.mxu0 0
        %495 = vmatprep.subr.bf16.mxu0 0
        %496 = vmatpush1.bf16.msra.mxu0 0
        %497 = vmatprep.subr.bf16.mxu0 0
        %498 = vmatpush1.bf16.msra.mxu0 0
        %499 = vmatprep.subr.bf16.mxu0 0
        %500 = vmatpush1.bf16.msra.mxu0 0
        %501 = vmatprep.subr.bf16.mxu0 0
        %502 = vmatpush1.bf16.msra.mxu0 0
        %503 = vmatprep.mubr.bf16.mxu0 0
        %504 = vmatmul.mubr.bf16.gmra.mrb[0].mxu0 %v469
        %v505 = vpop.f32.mrb[0].mxu0
        %v506 = vadd.f32 0.0, %v505
        %v507 = vpop.f32.mrb[0].mxu0
        %v508 = vpop.f32.mrb[0].mxu0
        %v509 = vpop.f32.mrb[0].mxu0
        %510 = vdwg.mxu0
        %v511 = vadd.f32 %v449, %v506
        %v512 = vxor.u32 %v511, 2147483648
        %v513 = vmul.f32 %v512, 1.442695
        %v514 = vpow.pop %v513
        %v515 = vadd.f32 %v514, 1.0
        %v516 = vrcp.pop %v515
        %v517 = vmul.f32 1.0, %v516
        %v518 = vtanh.pop %v511
        %520 = vrot.lane.b32.xlu0 %v448, 32
        %v521 = vpop.permute.xlu0 %520
        %v523 = vmul.f32 %v517, %v521
        %525 = vrot.lane.b32.xlu0 %v518, 64
        %v526 = vpop.permute.xlu0 %525
        %v528 = vmul.f32 %v517, %v526
        %530 = vrot.lane.b32.xlu0 %v528, 32
        %v531 = vpop.permute.xlu0 %530
        %v533 = vadd.f32 %v523, %v531
        %v534 = vtanh.pop %v533
        %536 = vrot.lane.b32.xlu0 %v534, 64
        %v537 = vpop.permute.xlu0 %536
        %v539 = vmul.f32 %v517, %v537
        %s540 = scalar_lea.vmem [#allocation4], 8
        %v541 = vld [vmem:[%s540] sm:$0xff]
        %v542 = vpack.c.bf16 %v539, %v539
        %544 = vrot.lane.b32.xlu0 %v542, 32
        %v545 = vpop.permute.xlu0 %544
        %v547 = vsel %vm467, %v545, 0
        %549 = vmatprep.subr.bf16.mxu0 0
        %550 = vmatpush1.bf16.msra.mxu0 %v463
        %551 = vmatprep.subr.bf16.mxu0 0
        %552 = vmatpush1.bf16.msra.mxu0 %v464
        %553 = vmatprep.subr.bf16.mxu0 0
        %554 = vmatpush1.bf16.msra.mxu0 0
        %555 = vmatprep.subr.bf16.mxu0 0
        %556 = vmatpush1.bf16.msra.mxu0 0
        %557 = vmatprep.subr.bf16.mxu0 0
        %558 = vmatpush1.bf16.msra.mxu0 0
        %559 = vmatprep.subr.bf16.mxu0 0
        %560 = vmatpush1.bf16.msra.mxu0 0
        %561 = vmatprep.subr.bf16.mxu0 0
        %562 = vmatpush1.bf16.msra.mxu0 0
        %563 = vmatprep.subr.bf16.mxu0 0
        %564 = vmatpush1.bf16.msra.mxu0 0
        %565 = vmatprep.subr.bf16.mxu0 0
        %566 = vmatpush1.bf16.msra.mxu0 0
        %567 = vmatprep.subr.bf16.mxu0 0
        %568 = vmatpush1.bf16.msra.mxu0 0
        %569 = vmatprep.subr.bf16.mxu0 0
        %570 = vmatpush1.bf16.msra.mxu0 0
        %571 = vmatprep.subr.bf16.mxu0 0
        %572 = vmatpush1.bf16.msra.mxu0 0
        %573 = vmatprep.subr.bf16.mxu0 0
        %574 = vmatpush1.bf16.msra.mxu0 0
        %575 = vmatprep.subr.bf16.mxu0 0
        %576 = vmatpush1.bf16.msra.mxu0 0
        %577 = vmatprep.subr.bf16.mxu0 0
        %578 = vmatpush1.bf16.msra.mxu0 0
        %579 = vmatprep.subr.bf16.mxu0 0
        %580 = vmatpush1.bf16.msra.mxu0 0
        %581 = vmatprep.mubr.bf16.mxu0 0
        %582 = vmatmul.mubr.bf16.gmra.mrb[0].mxu0 %v547
        %v583 = vpop.f32.mrb[0].mxu0
        %v584 = vadd.f32 0.0, %v583
        %v585 = vpop.f32.mrb[0].mxu0
        %v586 = vpop.f32.mrb[0].mxu0
        %v587 = vpop.f32.mrb[0].mxu0
        %588 = vdwg.mxu0
        %v589 = vadd.f32 %v541, %v584
        %v590 = vxor.u32 %v589, 2147483648
        %v591 = vmul.f32 %v590, 1.442695
        %v592 = vpow.pop %v591
        %v593 = vadd.f32 %v592, 1.0
        %v594 = vrcp.pop %v593
        %v595 = vmul.f32 1.0, %v594
        %v596 = vtanh.pop %v589
        %v597 = vmul.f32 %v595, %v533
        %599 = vrot.lane.b32.xlu0 %v596, 64
        %v600 = vpop.permute.xlu0 %599
        %v602 = vmul.f32 %v595, %v600
        %604 = vrot.lane.b32.xlu0 %v602, 32
        %v605 = vpop.permute.xlu0 %604
        %v607 = vadd.f32 %v597, %v605
        %v608 = vtanh.pop %v607
        %610 = vrot.lane.b32.xlu0 %v608, 64
        %v611 = vpop.permute.xlu0 %610
        %v613 = vmul.f32 %v595, %v611
        %s614 = scalar_lea.vmem [#allocation4], 16
        %v615 = vld [vmem:[%s614] sm:$0xff]
        %v616 = vpack.c.bf16 %v613, %v613
        %618 = vrot.lane.b32.xlu0 %v616, 32
        %v619 = vpop.permute.xlu0 %618
        %v621 = vsel %vm467, %v619, 0
        %623 = vmatprep.subr.bf16.mxu0 0
        %624 = vmatpush1.bf16.msra.mxu0 %v463
        %625 = vmatprep.subr.bf16.mxu0 0
        %626 = vmatpush1.bf16.msra.mxu0 %v464
        %627 = vmatprep.subr.bf16.mxu0 0
        %628 = vmatpush1.bf16.msra.mxu0 0
        %629 = vmatprep.subr.bf16.mxu0 0
        %630 = vmatpush1.bf16.msra.mxu0 0
        %631 = vmatprep.subr.bf16.mxu0 0
        %632 = vmatpush1.bf16.msra.mxu0 0
        %633 = vmatprep.subr.bf16.mxu0 0
        %634 = vmatpush1.bf16.msra.mxu0 0
        %635 = vmatprep.subr.bf16.mxu0 0
        %636 = vmatpush1.bf16.msra.mxu0 0
        %637 = vmatprep.subr.bf16.mxu0 0
        %638 = vmatpush1.bf16.msra.mxu0 0
        %639 = vmatprep.subr.bf16.mxu0 0
        %640 = vmatpush1.bf16.msra.mxu0 0
        %641 = vmatprep.subr.bf16.mxu0 0
        %642 = vmatpush1.bf16.msra.mxu0 0
        %643 = vmatprep.subr.bf16.mxu0 0
        %644 = vmatpush1.bf16.msra.mxu0 0
        %645 = vmatprep.subr.bf16.mxu0 0
        %646 = vmatpush1.bf16.msra.mxu0 0
        %647 = vmatprep.subr.bf16.mxu0 0
        %648 = vmatpush1.bf16.msra.mxu0 0
        %649 = vmatprep.subr.bf16.mxu0 0
        %650 = vmatpush1.bf16.msra.mxu0 0
        %651 = vmatprep.subr.bf16.mxu0 0
        %652 = vmatpush1.bf16.msra.mxu0 0
        %653 = vmatprep.subr.bf16.mxu0 0
        %654 = vmatpush1.bf16.msra.mxu0 0
        %655 = vmatprep.mubr.bf16.mxu0 0
        %656 = vmatmul.mubr.bf16.gmra.mrb[0].mxu0 %v621
        %v657 = vpop.f32.mrb[0].mxu0
        %v658 = vadd.f32 0.0, %v657
        %v659 = vpop.f32.mrb[0].mxu0
        %v660 = vpop.f32.mrb[0].mxu0
        %v661 = vpop.f32.mrb[0].mxu0
        %662 = vdwg.mxu0
        %v663 = vadd.f32 %v615, %v658
        %v664 = vxor.u32 %v663, 2147483648
        %v665 = vmul.f32 %v664, 1.442695
        %v666 = vpow.pop %v665
        %v667 = vadd.f32 %v666, 1.0
        %v668 = vrcp.pop %v667
        %v669 = vmul.f32 1.0, %v668
        %v670 = vtanh.pop %v663
        %v671 = vmul.f32 %v669, %v607
        %673 = vrot.lane.b32.xlu0 %v670, 64
        %v674 = vpop.permute.xlu0 %673
        %v676 = vmul.f32 %v669, %v674
        %678 = vrot.lane.b32.xlu0 %v676, 32
        %v679 = vpop.permute.xlu0 %678
        %v681 = vadd.f32 %v671, %v679
        %v682 = vtanh.pop %v681
        %684 = vrot.lane.b32.xlu0 %v682, 64
        %v685 = vpop.permute.xlu0 %684
        %v687 = vmul.f32 %v669, %v685
        %s688 = scalar_lea.vmem [#allocation4], 24
        %v689 = vld [vmem:[%s688] sm:$0xff]
        %v690 = vpack.c.bf16 %v687, %v687
        %692 = vrot.lane.b32.xlu0 %v690, 32
        %v693 = vpop.permute.xlu0 %692
        %v695 = vsel %vm467, %v693, 0
        %697 = vmatprep.subr.bf16.mxu0 0
        %698 = vmatpush1.bf16.msra.mxu0 %v463
        %699 = vmatprep.subr.bf16.mxu0 0
        %700 = vmatpush1.bf16.msra.mxu0 %v464
        %701 = vmatprep.subr.bf16.mxu0 0
        %702 = vmatpush1.bf16.msra.mxu0 0
        %703 = vmatprep.subr.bf16.mxu0 0
        %704 = vmatpush1.bf16.msra.mxu0 0
        %705 = vmatprep.subr.bf16.mxu0 0
        %706 = vmatpush1.bf16.msra.mxu0 0
        %707 = vmatprep.subr.bf16.mxu0 0
        %708 = vmatpush1.bf16.msra.mxu0 0
        %709 = vmatprep.subr.bf16.mxu0 0
        %710 = vmatpush1.bf16.msra.mxu0 0
        %711 = vmatprep.subr.bf16.mxu0 0
        %712 = vmatpush1.bf16.msra.mxu0 0
        %713 = vmatprep.subr.bf16.mxu0 0
        %714 = vmatpush1.bf16.msra.mxu0 0
        %715 = vmatprep.subr.bf16.mxu0 0
        %716 = vmatpush1.bf16.msra.mxu0 0
        %717 = vmatprep.subr.bf16.mxu0 0
        %718 = vmatpush1.bf16.msra.mxu0 0
        %719 = vmatprep.subr.bf16.mxu0 0
        %720 = vmatpush1.bf16.msra.mxu0 0
        %721 = vmatprep.subr.bf16.mxu0 0
        %722 = vmatpush1.bf16.msra.mxu0 0
        %723 = vmatprep.subr.bf16.mxu0 0
        %724 = vmatpush1.bf16.msra.mxu0 0
        %725 = vmatprep.subr.bf16.mxu0 0
        %726 = vmatpush1.bf16.msra.mxu0 0
        %727 = vmatprep.subr.bf16.mxu0 0
        %728 = vmatpush1.bf16.msra.mxu0 0
        %729 = vmatprep.mubr.bf16.mxu0 0
        %730 = vmatmul.mubr.bf16.gmra.mrb[0].mxu0 %v695
        %v731 = vpop.f32.mrb[0].mxu0
        %v732 = vadd.f32 0.0, %v731
        %v733 = vpop.f32.mrb[0].mxu0
        %v734 = vpop.f32.mrb[0].mxu0
        %v735 = vpop.f32.mrb[0].mxu0
        %736 = vdwg.mxu0
        %v737 = vadd.f32 %v689, %v732
        %v738 = vxor.u32 %v737, 2147483648
        %v739 = vmul.f32 %v738, 1.442695
        %v740 = vpow.pop %v739
        %v741 = vadd.f32 %v740, 1.0
        %v742 = vrcp.pop %v741
        %v743 = vmul.f32 1.0, %v742
        %v744 = vtanh.pop %v737
        %v745 = vmul.f32 %v743, %v681
        %747 = vrot.lane.b32.xlu0 %v744, 64
        %v748 = vpop.permute.xlu0 %747
        %v750 = vmul.f32 %v743, %v748
        %752 = vrot.lane.b32.xlu0 %v750, 32
        %v753 = vpop.permute.xlu0 %752
        %v755 = vadd.f32 %v745, %v753
        %v756 = vtanh.pop %v755
        %758 = vrot.lane.b32.xlu0 %v756, 64
        %v759 = vpop.permute.xlu0 %758
        %v761 = vmul.f32 %v743, %v759
        %763 = vrot.lane.b32.xlu0 %v761, 32
        %v764 = vpop.permute.xlu0 %763
        %766 = vst.msk [vmem:[#allocation2] sm:$0xff] %vm467, %v764
        %768 = vrot.lane.b32.xlu0 %v755, 96
        %v769 = vpop.permute.xlu0 %768
        %771 = vst.msk [vmem:[#allocation3] sm:$0xff] %vm467, %v769
        %p772 = scmp.eq.s32.totalorder %s26, 1
        // Predicated region
        $region61: #{tpu_custom_call.1} parent=55 // pred_check
          %p773 = pneg %p772
        $region62: #{tpu_custom_call.1} parent=55 // pred_check_branch
          %775 = sbr.rel (%p773) target = $region64
        $region63: #{tpu_custom_call.1} parent=55 // pred_region
          %v776 = vld [vmem:[%s349 + $0xc] sm:$0xf]
          %v777 = vld [vmem:[%s4] sm:$0xf]
          %v778 = vld [vmem:[%s4 + $0x4] sm:$0xf]
          %v779 = vld [vmem:[%s5] sm:$0x1]
          %v781 = vlaneseq
          %v782 = vshrl.u32 %v781, 7
          %v783 = vsub.s32 0, %v782
          %v784 = vrot.slane %v779, %v783
          %v788 = vunpack.c.l.b16 %v777
          %v789 = vunpack.c.l.b16 %v778
          %v790 = vpack.c.b16 %v789, %v788
          %v793 = vsel %vm387, %v776, 0
          %795 = vmatprep.subr.bf16.mxu0 0
          %796 = vmatpush1.bf16.msra.mxu0 %v790
          %797 = vmatprep.subr.bf16.mxu0 0
          %798 = vmatpush1.bf16.msra.mxu0 0
          %799 = vmatprep.subr.bf16.mxu0 0
          %800 = vmatpush1.bf16.msra.mxu0 0
          %801 = vmatprep.subr.bf16.mxu0 0
          %802 = vmatpush1.bf16.msra.mxu0 0
          %803 = vmatprep.subr.bf16.mxu0 0
          %804 = vmatpush1.bf16.msra.mxu0 0
          %805 = vmatprep.subr.bf16.mxu0 0
          %806 = vmatpush1.bf16.msra.mxu0 0
          %807 = vmatprep.subr.bf16.mxu0 0
          %808 = vmatpush1.bf16.msra.mxu0 0
          %809 = vmatprep.subr.bf16.mxu0 0
          %810 = vmatpush1.bf16.msra.mxu0 0
          %811 = vmatprep.subr.bf16.mxu0 0
          %812 = vmatpush1.bf16.msra.mxu0 0
          %813 = vmatprep.subr.bf16.mxu0 0
          %814 = vmatpush1.bf16.msra.mxu0 0
          %815 = vmatprep.subr.bf16.mxu0 0
          %816 = vmatpush1.bf16.msra.mxu0 0
          %817 = vmatprep.subr.bf16.mxu0 0
          %818 = vmatpush1.bf16.msra.mxu0 0
          %819 = vmatprep.subr.bf16.mxu0 0
          %820 = vmatpush1.bf16.msra.mxu0 0
          %821 = vmatprep.subr.bf16.mxu0 0
          %822 = vmatpush1.bf16.msra.mxu0 0
          %823 = vmatprep.subr.bf16.mxu0 0
          %824 = vmatpush1.bf16.msra.mxu0 0
          %825 = vmatprep.subr.bf16.mxu0 0
          %826 = vmatpush1.bf16.msra.mxu0 0
          %827 = vmatprep.mubr.bf16.mxu0 0
          %828 = vmatmul.mubr.bf16.gmra.mrb[0].mxu0 %v793
          %v829 = vpop.f32.mrb[0].mxu0
          %v830 = vadd.f32 %v784, %v829
          %v831 = vpop.f32.mrb[0].mxu0
          %v832 = vpop.f32.mrb[0].mxu0
          %v833 = vpop.f32.mrb[0].mxu0
          %834 = vdwg.mxu0
          %v835 = vxor.u32 %v830, 2147483648
          %v836 = vmul.f32 %v835, 1.442695
          %v837 = vpow.pop %v836
          %v838 = vadd.f32 %v837, 1.0
          %v839 = vrcp.pop %v838
          %v840 = vmul.f32 1.0, %v839
          %v841 = vtanh.pop %v830
          %843 = vrot.lane.b32.xlu0 %v841, 64
          %v844 = vpop.permute.xlu0 %843
          %v846 = vmul.f32 %v840, %v844
          %v847 = vtanh.pop %v846
          %849 = vrot.lane.b32.xlu0 %v847, 96
          %v850 = vpop.permute.xlu0 %849
          %v852 = vmul.f32 %v840, %v850
          %v853 = vpack.c.bf16 %v761, %v761
          %v854 = vld [vmem:[%s6] sm:$0xf]
          %v855 = vld [vmem:[%s6 + $0x4] sm:$0xf]
          %v856 = vld [vmem:[%s6 + $0x8] sm:$0xf]
          %v857 = vld [vmem:[%s6 + $0xc] sm:$0xf]
          %v858 = vpack.c.bf16 %v852, %v852
          %v859 = vld [vmem:[%s7] sm:$0xf]
          %v860 = vld [vmem:[%s7 + $0x4] sm:$0xf]
          %v861 = vld [vmem:[%s7 + $0x8] sm:$0xf]
          %v862 = vld [vmem:[%s7 + $0xc] sm:$0xf]
          %864 = vrot.lane.b32.xlu0 %v858, 32
          %v865 = vpop.permute.xlu0 %864
          %v870 = vunpack.c.l.b16 %v859
          %v871 = vunpack.c.l.b16 %v860
          %v872 = vunpack.c.l.b16 %v861
          %v873 = vunpack.c.l.b16 %v862
          %v874 = vpack.c.b16 %v871, %v870
          %v875 = vpack.c.b16 %v873, %v872
          %v879 = vsel %vm467, %v865, 0
          %881 = vmatprep.subr.bf16.mxu0 0
          %882 = vmatpush1.bf16.msra.mxu0 %v874
          %883 = vmatprep.subr.bf16.mxu0 0
          %884 = vmatpush1.bf16.msra.mxu0 %v875
          %885 = vmatprep.subr.bf16.mxu0 0
          %886 = vmatpush1.bf16.msra.mxu0 0
          %887 = vmatprep.subr.bf16.mxu0 0
          %888 = vmatpush1.bf16.msra.mxu0 0
          %889 = vmatprep.subr.bf16.mxu0 0
          %890 = vmatpush1.bf16.msra.mxu0 0
          %891 = vmatprep.subr.bf16.mxu0 0
          %892 = vmatpush1.bf16.msra.mxu0 0
          %893 = vmatprep.subr.bf16.mxu0 0
          %894 = vmatpush1.bf16.msra.mxu0 0
          %895 = vmatprep.subr.bf16.mxu0 0
          %896 = vmatpush1.bf16.msra.mxu0 0
          %897 = vmatprep.subr.bf16.mxu0 0
          %898 = vmatpush1.bf16.msra.mxu0 0
          %899 = vmatprep.subr.bf16.mxu0 0
          %900 = vmatpush1.bf16.msra.mxu0 0
          %901 = vmatprep.subr.bf16.mxu0 0
          %902 = vmatpush1.bf16.msra.mxu0 0
          %903 = vmatprep.subr.bf16.mxu0 0
          %904 = vmatpush1.bf16.msra.mxu0 0
          %905 = vmatprep.subr.bf16.mxu0 0
          %906 = vmatpush1.bf16.msra.mxu0 0
          %907 = vmatprep.subr.bf16.mxu0 0
          %908 = vmatpush1.bf16.msra.mxu0 0
          %909 = vmatprep.subr.bf16.mxu0 0
          %910 = vmatpush1.bf16.msra.mxu0 0
          %911 = vmatprep.subr.bf16.mxu0 0
          %912 = vmatpush1.bf16.msra.mxu0 0
          %913 = vmatprep.mubr.bf16.mxu0 0
          %914 = vmatmul.mubr.bf16.gmra.mrb[0].mxu0 %v879
          %v915 = vpop.f32.mrb[0].mxu0
          %v916 = vadd.f32 0.0, %v915
          %v917 = vpop.f32.mrb[0].mxu0
          %v918 = vpop.f32.mrb[0].mxu0
          %v919 = vpop.f32.mrb[0].mxu0
          %920 = vdwg.mxu0
          %922 = vrot.lane.b32.xlu0 %v853, 32
          %v923 = vpop.permute.xlu0 %922
          %v928 = vunpack.c.l.b16 %v854
          %v929 = vunpack.c.l.b16 %v855
          %v930 = vunpack.c.l.b16 %v856
          %v931 = vunpack.c.l.b16 %v857
          %v932 = vpack.c.b16 %v929, %v928
          %v933 = vpack.c.b16 %v931, %v930
          %v937 = vsel %vm467, %v923, 0
          %939 = vmatprep.subr.bf16.mxu0 0
          %940 = vmatpush1.bf16.msra.mxu0 %v932
          %941 = vmatprep.subr.bf16.mxu0 0
          %942 = vmatpush1.bf16.msra.mxu0 %v933
          %943 = vmatprep.subr.bf16.mxu0 0
          %944 = vmatpush1.bf16.msra.mxu0 0
          %945 = vmatprep.subr.bf16.mxu0 0
          %946 = vmatpush1.bf16.msra.mxu0 0
          %947 = vmatprep.subr.bf16.mxu0 0
          %948 = vmatpush1.bf16.msra.mxu0 0
          %949 = vmatprep.subr.bf16.mxu0 0
          %950 = vmatpush1.bf16.msra.mxu0 0
          %951 = vmatprep.subr.bf16.mxu0 0
          %952 = vmatpush1.bf16.msra.mxu0 0
          %953 = vmatprep.subr.bf16.mxu0 0
          %954 = vmatpush1.bf16.msra.mxu0 0
          %955 = vmatprep.subr.bf16.mxu0 0
          %956 = vmatpush1.bf16.msra.mxu0 0
          %957 = vmatprep.subr.bf16.mxu0 0
          %958 = vmatpush1.bf16.msra.mxu0 0
          %959 = vmatprep.subr.bf16.mxu0 0
          %960 = vmatpush1.bf16.msra.mxu0 0
          %961 = vmatprep.subr.bf16.mxu0 0
          %962 = vmatpush1.bf16.msra.mxu0 0
          %963 = vmatprep.subr.bf16.mxu0 0
          %964 = vmatpush1.bf16.msra.mxu0 0
          %965 = vmatprep.subr.bf16.mxu0 0
          %966 = vmatpush1.bf16.msra.mxu0 0
          %967 = vmatprep.subr.bf16.mxu0 0
          %968 = vmatpush1.bf16.msra.mxu0 0
          %969 = vmatprep.subr.bf16.mxu0 0
          %970 = vmatpush1.bf16.msra.mxu0 0
          %971 = vmatprep.mubr.bf16.mxu0 0
          %972 = vmatmul.mubr.bf16.gmra.mrb[0].mxu0 %v937
          %v973 = vpop.f32.mrb[0].mxu0
          %v974 = vadd.f32 %v916, %v973
          %v975 = vpop.f32.mrb[0].mxu0
          %v976 = vpop.f32.mrb[0].mxu0
          %v977 = vpop.f32.mrb[0].mxu0
          %978 = vdwg.mxu0
          %v979 = vld [vmem:[%s8] sm:$0x1]
          %v981 = vlaneseq
          %v982 = vshrl.u32 %v981, 7
          %v983 = vsub.s32 0, %v982
          %v984 = vrot.slane %v979, %v983
          %v986 = vadd.f32 %v974, %v984
          %987 = vst.msk [vmem:[#allocation5] sm:$0xff] %vm387, %v986
        $region64: #{tpu_custom_call.1} parent=55 // pred_fallthru
          _
        // Predicated region
        $region65: #{tpu_custom_call.1} parent=55 // pred_check
          %p988 = pneg %p247
        $region66: #{tpu_custom_call.1} parent=55 // pred_check_branch
          %990 = sbr.rel (%p988) target = $region68
        $region67: #{tpu_custom_call.1} parent=55 // pred_region
          %s992 = ssub.s32 128, 128
          %993 = vsyncadd [#allocation6], %s992
          %s994 = smul.addr %s25, 128
          %s995 = scalar_lea.hbm %s9, %s994
          %s997 = sshll.u32 [#allocation5], 4
          %s998 = int_to_ptr.vmem [resolvable:$true] %s997
          %1000 = dma.vmem_to_hbm [thread:$0]  %s998, 128, %s995, [#allocation6]
        $region68: #{tpu_custom_call.1} parent=55 // pred_fallthru
          _
        // Predicated region
        $region69: #{tpu_custom_call.1} parent=55 // pred_check
          %p1001 = pneg %p247
        $region70: #{tpu_custom_call.1} parent=55 // pred_check_branch
          %1003 = sbr.rel (%p1001) target = $region72
        $region71: #{tpu_custom_call.1} parent=55 // pred_region
          %1004 = dma.done [#allocation6], 128
        $region72: #{tpu_custom_call.1} parent=55 // pred_fallthru
          _
      $region56: #{tpu_custom_call.1} parent=5 // pred_fallthru
        _
      %p1005 = scmp.le.s32.totalorder 2, %s16
      // Predicated region
      $region73: #{tpu_custom_call.1} parent=5 // pred_check
        %p1006 = pneg %p1005
      $region74: #{tpu_custom_call.1} parent=5 // pred_check_branch
        %1008 = sbr.rel (%p1006) target = $region76
      $region75: #{tpu_custom_call.1} parent=5 // pred_region
        %s1009 = ssub.s32 %s16, 2
      $region76: #{tpu_custom_call.1} parent=5 // pred_fallthru
        _
    $region6: #{tpu_custom_call.1} parent=1 // loop_footer
      %s20 = sadd.s32 1, %s16
    $region7: #{tpu_custom_call.1} parent=1 // loop_footer_branch
      %15 = sbr.rel target = $region3
    $region8: #{tpu_custom_call.1} parent=1 // loop_exit
      _
    %1010 = vsyncpa [#allocation6], 1
    %s1011 = scalar_lea.sflag [#allocation6], 1
    %1012 = vsyncpa %s1011, 1

</llo_original>
